<compile_context>
chip_gen: v7x
topology: tpu7x:2x2x1
jax: 0.10.0
libtpu: 0.0.40
codegen_flags: <defaults>
</compile_context>

<pallas_src>
import jax
import jax.numpy as jnp
from jax.experimental import pallas as pl
from jax.experimental.pallas import tpu as pltpu

# ---------------- model dims -------------------------------------------------
IN_DIM = 32        # raw input features fed to the encoder
ENC_HID = 64       # encoder hidden width
LATENT = 64        # encoder output == fc "input_dim"
FC_HID = 32        # fc hidden
NUM_CLASSES = 10
PAD_CLASSES = 128  # lane-dense output width (>= NUM_CLASSES, multiple of 128)
TB_MAX = 1024      # batch tile cap (rows); multiple of 128 (MXU M alignment)


# ------------------------------- kernel --------------------------------------
def classifier_kernel(x_ref,
                      we1_ref, be1_ref,   # encoder L1: (32,64)  bf16, (1,64)  f32
                      we2_ref, be2_ref,   # encoder L2: (64,64)  bf16, (1,64)  f32
                      wf1_ref, bf1_ref,   # fc L1:      (64,32)  bf16, (1,32)  f32
                      wf2_ref, bf2_ref,   # fc L2:      (32,128) bf16, (1,128) f32 (zero padded)
                      out_ref):           # (TB, 128) f32
    x = x_ref[...]                                               # (TB, 32) bf16

    # --- frozen encoder ---
    h = jnp.dot(x, we1_ref[...], preferred_element_type=jnp.float32) + be1_ref[...]
    h = jnp.maximum(h, 0.0).astype(jnp.bfloat16)
    z = jnp.dot(h, we2_ref[...], preferred_element_type=jnp.float32) + be2_ref[...]
    z = jnp.maximum(z, 0.0).astype(jnp.bfloat16)

    # --- flatten: z is already (TB, LATENT), matches x.view(B, -1) ---

    # --- classifier head (padded to 128 output lanes) ---
    f = jnp.dot(z, wf1_ref[...], preferred_element_type=jnp.float32) + bf1_ref[...]
    f = jnp.maximum(f, 0.0).astype(jnp.bfloat16)
    logits = jnp.dot(f, wf2_ref[...], preferred_element_type=jnp.float32) + bf2_ref[...]

    out_ref[...] = logits.astype(out_ref.dtype)                  # lane-dense unmasked store


# ------------------------------- wrapper --------------------------------------
def fine_tuned_classifier(x, params):
    """x: (B, IN_DIM) float32.  params: dict of weights/biases (see init_params)."""
    B = x.shape[0]

    # Batch tile: cover small batches in one 128-aligned tile, cap at TB_MAX.
    TB = min(TB_MAX, ((B + 127) // 128) * 128)
    B_pad = pl.cdiv(B, TB) * TB
    if B_pad != B:
        x = jnp.pad(x, ((0, B_pad - B), (0, 0)))

    bf16 = jnp.bfloat16
    x_bf = x.astype(bf16)

    we1 = params["we1"].astype(bf16)
    we2 = params["we2"].astype(bf16)
    wf1 = params["wf1"].astype(bf16)
    be1 = params["be1"].astype(jnp.float32)
    be2 = params["be2"].astype(jnp.float32)
    bf1 = params["bf1"].astype(jnp.float32)

    # Zero-pad the final layer to 128 output columns (lane-dense output).
    wf2 = jnp.zeros((FC_HID, PAD_CLASSES), bf16).at[:, :NUM_CLASSES].set(
        params["wf2"].astype(bf16))
    bf2 = jnp.zeros((1, PAD_CLASSES), jnp.float32).at[:, :NUM_CLASSES].set(
        params["bf2"].astype(jnp.float32))

    def full_block(arr):
        # Whole array, same block every grid step (DMA'd once, stays VMEM resident).
        return pl.BlockSpec(arr.shape, lambda i: (0,) * arr.ndim)

    grid = (B_pad // TB,)
    out = pl.pallas_call(
        classifier_kernel,
        out_shape=jax.ShapeDtypeStruct((B_pad, PAD_CLASSES), jnp.float32),
        grid_spec=pltpu.PrefetchScalarGridSpec(
            num_scalar_prefetch=0,
            grid=grid,
            in_specs=[
                pl.BlockSpec((TB, IN_DIM), lambda i: (i, 0)),    # x: tile batch
                full_block(we1), full_block(be1),
                full_block(we2), full_block(be2),
                full_block(wf1), full_block(bf1),
                full_block(wf2), full_block(bf2),
            ],
            out_specs=pl.BlockSpec((TB, PAD_CLASSES), lambda i: (i, 0)),
        ),
        compiler_params=pltpu.CompilerParams(
            dimension_semantics=("parallel",)),   # batch axis shards across TCs
    )(x_bf, we1, be1, we2, be2, wf1, bf1, wf2, bf2)

    return out[:B, :NUM_CLASSES]


# ---------------------------- deterministic init ------------------------------
def init_params(key):
    ks = jax.random.split(key, 8)

    def lin_w(kw, fan_in, fan_out):
        bound = 1.0 / jnp.sqrt(fan_in)
        return jax.random.uniform(kw, (fan_in, fan_out), jnp.float32, -bound, bound)

    def lin_b(kb, fan_in, fan_out):
        bound = 1.0 / jnp.sqrt(fan_in)
        return jax.random.uniform(kb, (1, fan_out), jnp.float32, -bound, bound)

    return {
        "we1": lin_w(ks[0], IN_DIM, ENC_HID),  "be1": lin_b(ks[1], IN_DIM, ENC_HID),
        "we2": lin_w(ks[2], ENC_HID, LATENT),  "be2": lin_b(ks[3], ENC_HID, LATENT),
        "wf1": lin_w(ks[4], LATENT, FC_HID),   "bf1": lin_b(ks[5], LATENT, FC_HID),
        "wf2": lin_w(ks[6], FC_HID, NUM_CLASSES),
        "bf2": lin_b(ks[7], FC_HID, NUM_CLASSES),
    }


def reference_forward(x, p):
    # Reference with the same bf16-rounded inputs/weights the kernel consumes,
    # but f32 matmuls / f32 intermediates.
    r = lambda a: a.astype(jnp.bfloat16).astype(jnp.float32)
    h = jnp.maximum(r(x) @ r(p["we1"]) + p["be1"], 0.0)
    z = jnp.maximum(h @ r(p["we2"]) + p["be2"], 0.0)
    f = jnp.maximum(z @ r(p["wf1"]) + p["bf1"], 0.0)
    return f @ r(p["wf2"]) + p["bf2"]


if __name__ == "__main__":
    key = jax.random.PRNGKey(0)
    k_x, k_p = jax.random.split(key)

    params = init_params(k_p)

    ok = True
    for B in (64, 200):   # 200 exercises the batch-padding path
        x = jax.random.normal(jax.random.fold_in(k_x, B), (B, IN_DIM), jnp.float32)
        logits = fine_tuned_classifier(x, params)
        logits = jax.block_until_ready(logits)

        ref = reference_forward(x, params)
        ok &= logits.shape == (B, NUM_CLASSES)
        ok &= bool(jnp.allclose(logits, ref, atol=5e-2, rtol=5e-2))

    assert ok
    print("KERNEL_OK")
</pallas_src>

<mosaic_0001>
module attributes {stable_mosaic.version = 11 : i64} {
  func.func @classifier_kernel(%arg0: i32, %arg1: memref<128x32xbf16, #tpu.memory_space<vmem>>, %arg2: memref<32x64xbf16, #tpu.memory_space<vmem>>, %arg3: memref<1x64xf32, #tpu.memory_space<vmem>>, %arg4: memref<64x64xbf16, #tpu.memory_space<vmem>>, %arg5: memref<1x64xf32, #tpu.memory_space<vmem>>, %arg6: memref<64x32xbf16, #tpu.memory_space<vmem>>, %arg7: memref<1x32xf32, #tpu.memory_space<vmem>>, %arg8: memref<32x128xbf16, #tpu.memory_space<vmem>>, %arg9: memref<1x128xf32, #tpu.memory_space<vmem>>, %arg10: memref<128x128xf32, #tpu.memory_space<vmem>>) attributes {dimension_semantics = [#tpu.dimension_semantics<parallel>], iteration_bounds = array<i64: 1>, scalar_prefetch = 0 : i64, scratch_operands = 0 : i64, tpu.core_type = #tpu.core_type<tc>, window_params = [{transform_indices = @transform_0, window_bounds = array<i64: 128, 32>}, {pipeline_mode = #tpu.pipeline_mode<synchronous>, transform_indices = @transform_1, window_bounds = array<i64: 32, 64>}, {pipeline_mode = #tpu.pipeline_mode<synchronous>, transform_indices = @transform_2, window_bounds = array<i64: 1, 64>}, {pipeline_mode = #tpu.pipeline_mode<synchronous>, transform_indices = @transform_3, window_bounds = array<i64: 64, 64>}, {pipeline_mode = #tpu.pipeline_mode<synchronous>, transform_indices = @transform_4, window_bounds = array<i64: 1, 64>}, {pipeline_mode = #tpu.pipeline_mode<synchronous>, transform_indices = @transform_5, window_bounds = array<i64: 64, 32>}, {pipeline_mode = #tpu.pipeline_mode<synchronous>, transform_indices = @transform_6, window_bounds = array<i64: 1, 32>}, {pipeline_mode = #tpu.pipeline_mode<synchronous>, transform_indices = @transform_7, window_bounds = array<i64: 32, 128>}, {pipeline_mode = #tpu.pipeline_mode<synchronous>, transform_indices = @transform_8, window_bounds = array<i64: 1, 128>}, {transform_indices = @transform_9, window_bounds = array<i64: 128, 128>}]} {
    %c0 = arith.constant 0 : index
    %c0_0 = arith.constant 0 : index
    %0 = vector.load %arg1[%c0, %c0_0] : memref<128x32xbf16, #tpu.memory_space<vmem>>, vector<128x32xbf16>
    %c0_1 = arith.constant 0 : index
    %c0_2 = arith.constant 0 : index
    %1 = vector.load %arg2[%c0_1, %c0_2] : memref<32x64xbf16, #tpu.memory_space<vmem>>, vector<32x64xbf16>
    %cst = arith.constant dense<0.000000e+00> : vector<128x64xf32>
    %2 = tpu.matmul %0, %1, %cst {dimension_numbers = #tpu.dot_dimension_numbers<[1], [0], [0], [1], [0, 0, 1, 1], [], []>} : vector<128x32xbf16>, vector<32x64xbf16>, vector<128x64xf32> -> vector<128x64xf32>
    %c0_3 = arith.constant 0 : index
    %c0_4 = arith.constant 0 : index
    %3 = vector.load %arg3[%c0_3, %c0_4] : memref<1x64xf32, #tpu.memory_space<vmem>>, vector<1x64xf32>
    %4 = vector.broadcast %3 : vector<1x64xf32> to vector<128x64xf32>
    %5 = arith.addf %2, %4 : vector<128x64xf32>
    %cst_5 = arith.constant 0.000000e+00 : f32
    %6 = vector.broadcast %cst_5 : f32 to vector<128x64xf32>
    %7 = arith.maximumf %5, %6 : vector<128x64xf32>
    %8 = arith.truncf %7 : vector<128x64xf32> to vector<128x64xbf16>
    %c0_6 = arith.constant 0 : index
    %c0_7 = arith.constant 0 : index
    %9 = vector.load %arg4[%c0_6, %c0_7] : memref<64x64xbf16, #tpu.memory_space<vmem>>, vector<64x64xbf16>
    %cst_8 = arith.constant dense<0.000000e+00> : vector<128x64xf32>
    %10 = tpu.matmul %8, %9, %cst_8 {dimension_numbers = #tpu.dot_dimension_numbers<[1], [0], [0], [1], [0, 0, 1, 1], [], []>} : vector<128x64xbf16>, vector<64x64xbf16>, vector<128x64xf32> -> vector<128x64xf32>
    %c0_9 = arith.constant 0 : index
    %c0_10 = arith.constant 0 : index
    %11 = vector.load %arg5[%c0_9, %c0_10] : memref<1x64xf32, #tpu.memory_space<vmem>>, vector<1x64xf32>
    %12 = vector.broadcast %11 : vector<1x64xf32> to vector<128x64xf32>
    %13 = arith.addf %10, %12 : vector<128x64xf32>
    %cst_11 = arith.constant 0.000000e+00 : f32
    %14 = vector.broadcast %cst_11 : f32 to vector<128x64xf32>
    %15 = arith.maximumf %13, %14 : vector<128x64xf32>
    %16 = arith.truncf %15 : vector<128x64xf32> to vector<128x64xbf16>
    %c0_12 = arith.constant 0 : index
    %c0_13 = arith.constant 0 : index
    %17 = vector.load %arg6[%c0_12, %c0_13] : memref<64x32xbf16, #tpu.memory_space<vmem>>, vector<64x32xbf16>
    %cst_14 = arith.constant dense<0.000000e+00> : vector<128x32xf32>
    %18 = tpu.matmul %16, %17, %cst_14 {dimension_numbers = #tpu.dot_dimension_numbers<[1], [0], [0], [1], [0, 0, 1, 1], [], []>} : vector<128x64xbf16>, vector<64x32xbf16>, vector<128x32xf32> -> vector<128x32xf32>
    %c0_15 = arith.constant 0 : index
    %c0_16 = arith.constant 0 : index
    %19 = vector.load %arg7[%c0_15, %c0_16] : memref<1x32xf32, #tpu.memory_space<vmem>>, vector<1x32xf32>
    %20 = vector.broadcast %19 : vector<1x32xf32> to vector<128x32xf32>
    %21 = arith.addf %18, %20 : vector<128x32xf32>
    %cst_17 = arith.constant 0.000000e+00 : f32
    %22 = vector.broadcast %cst_17 : f32 to vector<128x32xf32>
    %23 = arith.maximumf %21, %22 : vector<128x32xf32>
    %24 = arith.truncf %23 : vector<128x32xf32> to vector<128x32xbf16>
    %c0_18 = arith.constant 0 : index
    %c0_19 = arith.constant 0 : index
    %25 = vector.load %arg8[%c0_18, %c0_19] : memref<32x128xbf16, #tpu.memory_space<vmem>>, vector<32x128xbf16>
    %cst_20 = arith.constant dense<0.000000e+00> : vector<128x128xf32>
    %26 = tpu.matmul %24, %25, %cst_20 {dimension_numbers = #tpu.dot_dimension_numbers<[1], [0], [0], [1], [0, 0, 1, 1], [], []>} : vector<128x32xbf16>, vector<32x128xbf16>, vector<128x128xf32> -> vector<128x128xf32>
    %c0_21 = arith.constant 0 : index
    %c0_22 = arith.constant 0 : index
    %27 = vector.load %arg9[%c0_21, %c0_22] : memref<1x128xf32, #tpu.memory_space<vmem>>, vector<1x128xf32>
    %28 = vector.broadcast %27 : vector<1x128xf32> to vector<128x128xf32>
    %29 = arith.addf %26, %28 : vector<128x128xf32>
    %c0_23 = arith.constant 0 : index
    %c0_24 = arith.constant 0 : index
    %30 = vector.load %arg10[%c0_23, %c0_24] : memref<128x128xf32, #tpu.memory_space<vmem>>, vector<128x128xf32>
    tpu.vector_store %arg10[%c0_23, %c0_24], %29 {strides = array<i32>} : memref<128x128xf32, #tpu.memory_space<vmem>>, vector<128x128xf32>,
    return
  }
  func.func @transform_0(%arg0: i32) -> (i32, i32) {
    %c0_i32 = arith.constant 0 : i32
    %c0_i32_0 = arith.constant 0 : i32
    return %arg0, %c0_i32 : i32, i32
  }
  func.func @transform_1(%arg0: i32) -> (i32, i32) {
    %c0_i32 = arith.constant 0 : i32
    %c0_i32_0 = arith.constant 0 : i32
    %c0_i32_1 = arith.constant 0 : i32
    return %c0_i32, %c0_i32_0 : i32, i32
  }
  func.func @transform_2(%arg0: i32) -> (i32, i32) {
    %c0_i32 = arith.constant 0 : i32
    %c0_i32_0 = arith.constant 0 : i32
    %c0_i32_1 = arith.constant 0 : i32
    return %c0_i32, %c0_i32_0 : i32, i32
  }
  func.func @transform_3(%arg0: i32) -> (i32, i32) {
    %c0_i32 = arith.constant 0 : i32
    %c0_i32_0 = arith.constant 0 : i32
    %c0_i32_1 = arith.constant 0 : i32
    return %c0_i32, %c0_i32_0 : i32, i32
  }
  func.func @transform_4(%arg0: i32) -> (i32, i32) {
    %c0_i32 = arith.constant 0 : i32
    %c0_i32_0 = arith.constant 0 : i32
    %c0_i32_1 = arith.constant 0 : i32
    return %c0_i32, %c0_i32_0 : i32, i32
  }
  func.func @transform_5(%arg0: i32) -> (i32, i32) {
    %c0_i32 = arith.constant 0 : i32
    %c0_i32_0 = arith.constant 0 : i32
    %c0_i32_1 = arith.constant 0 : i32
    return %c0_i32, %c0_i32_0 : i32, i32
  }
  func.func @transform_6(%arg0: i32) -> (i32, i32) {
    %c0_i32 = arith.constant 0 : i32
    %c0_i32_0 = arith.constant 0 : i32
    %c0_i32_1 = arith.constant 0 : i32
    return %c0_i32, %c0_i32_0 : i32, i32
  }
  func.func @transform_7(%arg0: i32) -> (i32, i32) {
    %c0_i32 = arith.constant 0 : i32
    %c0_i32_0 = arith.constant 0 : i32
    %c0_i32_1 = arith.constant 0 : i32
    return %c0_i32, %c0_i32_0 : i32, i32
  }
  func.func @transform_8(%arg0: i32) -> (i32, i32) {
    %c0_i32 = arith.constant 0 : i32
    %c0_i32_0 = arith.constant 0 : i32
    %c0_i32_1 = arith.constant 0 : i32
    return %c0_i32, %c0_i32_0 : i32, i32
  }
  func.func @transform_9(%arg0: i32) -> (i32, i32) {
    %c0_i32 = arith.constant 0 : i32
    %c0_i32_0 = arith.constant 0 : i32
    return %arg0, %c0_i32 : i32, i32
  }
}

</mosaic_0001>

<llo_original>
// kernel: tpu_custom_call.1
$region0: #{tpu_custom_call.1}
  #allocation0 [shape = 'u32[]', space=smem, size = 0x4, offset = 0x4, fixed_abs, tag = 'smem constant byte address 0x4 - core index']
  #allocation1 [shape = 'u32[144,128]{1,0:T(1,128)}', space=vmem, size = 0x12000, scoped, tag = 'internal scratch']
  %s0 = inlined_call_operand.vmem [shape: bf16[128,32], index: 0, kind: input, shape index: {}]
  %s1 = inlined_call_operand.vmem [shape: bf16[32,64], index: 1, kind: input, shape index: {}]
  %s2 = inlined_call_operand.vmem [shape: f32[1,64], index: 2, kind: input, shape index: {}]
  %s3 = inlined_call_operand.vmem [shape: bf16[64,64], index: 3, kind: input, shape index: {}]
  %s4 = inlined_call_operand.vmem [shape: f32[1,64], index: 4, kind: input, shape index: {}]
  %s5 = inlined_call_operand.vmem [shape: bf16[64,32], index: 5, kind: input, shape index: {}]
  %s6 = inlined_call_operand.vmem [shape: f32[1,32], index: 6, kind: input, shape index: {}]
  %s7 = inlined_call_operand.vmem [shape: bf16[32,128], index: 7, kind: input, shape index: {}]
  %s8 = inlined_call_operand.vmem [shape: f32[1,128], index: 8, kind: input, shape index: {}]
  %s9 = inlined_call_operand.hbm [shape: f32[128,128], index: 9, kind: output, shape index: {}]
  %s10 = sld [smem:[#allocation0]]
  $region46: #{tpu_custom_call.1} parent=0
    _
  %s12 = ssub.s32 1, %s10
  %s13 = scalar_select 0, %s12, %s10
  $region1: #{tpu_custom_call.1} parent=0
    #allocation2 [shape = 'u8[65536]{0}', space=vmem, size = 0x10000, scoped, tag = 'output window, operand 0, single buffered']
    #allocation3 [shape = 's32[1]{0}', space=sflag, size = 0x4, scoped, tag = 'scoped memory for tpu_custom_call.1']
    %14 = vsyncpa [#allocation3], 0
    // Predicated region
    $region2: #{tpu_custom_call.1} parent=1 // pred_check
      _
    $region3: #{tpu_custom_call.1} parent=1 // pred_check_branch
      %16 = sbr.rel (0) target = $region5
    $region4: #{tpu_custom_call.1} parent=1 // pred_region
      _
    $region5: #{tpu_custom_call.1} parent=1 // pred_fallthru
      _
    // Predicated region
    $region6: #{tpu_custom_call.1} parent=1 // pred_check
      _
    $region7: #{tpu_custom_call.1} parent=1 // pred_check_branch
      %18 = sbr.rel (0) target = $region9
    $region8: #{tpu_custom_call.1} parent=1 // pred_region
      _
    $region9: #{tpu_custom_call.1} parent=1 // pred_fallthru
      _
    // Predicated region
    $region10: #{tpu_custom_call.1} parent=1 // pred_check
      _
    $region11: #{tpu_custom_call.1} parent=1 // pred_check_branch
      %20 = sbr.rel (0) target = $region13
    $region12: #{tpu_custom_call.1} parent=1 // pred_region
      _
    $region13: #{tpu_custom_call.1} parent=1 // pred_fallthru
      _
    // Predicated region
    $region14: #{tpu_custom_call.1} parent=1 // pred_check
      _
    $region15: #{tpu_custom_call.1} parent=1 // pred_check_branch
      %22 = sbr.rel (0) target = $region17
    $region16: #{tpu_custom_call.1} parent=1 // pred_region
      _
    $region17: #{tpu_custom_call.1} parent=1 // pred_fallthru
      _
    // Predicated region
    $region18: #{tpu_custom_call.1} parent=1 // pred_check
      _
    $region19: #{tpu_custom_call.1} parent=1 // pred_check_branch
      %24 = sbr.rel (0) target = $region21
    $region20: #{tpu_custom_call.1} parent=1 // pred_region
      _
    $region21: #{tpu_custom_call.1} parent=1 // pred_fallthru
      _
    // Predicated region
    $region22: #{tpu_custom_call.1} parent=1 // pred_check
      _
    $region23: #{tpu_custom_call.1} parent=1 // pred_check_branch
      %26 = sbr.rel (0) target = $region25
    $region24: #{tpu_custom_call.1} parent=1 // pred_region
      _
    $region25: #{tpu_custom_call.1} parent=1 // pred_fallthru
      _
    // Predicated region
    $region26: #{tpu_custom_call.1} parent=1 // pred_check
      _
    $region27: #{tpu_custom_call.1} parent=1 // pred_check_branch
      %28 = sbr.rel (0) target = $region29
    $region28: #{tpu_custom_call.1} parent=1 // pred_region
      _
    $region29: #{tpu_custom_call.1} parent=1 // pred_fallthru
      _
    // Predicated region
    $region30: #{tpu_custom_call.1} parent=1 // pred_check
      _
    $region31: #{tpu_custom_call.1} parent=1 // pred_check_branch
      %30 = sbr.rel (0) target = $region33
    $region32: #{tpu_custom_call.1} parent=1 // pred_region
      _
    $region33: #{tpu_custom_call.1} parent=1 // pred_fallthru
      _
    // Predicated region
    $region34: #{tpu_custom_call.1} parent=1 // pred_check
      _
    $region35: #{tpu_custom_call.1} parent=1 // pred_check_branch
      %32 = sbr.rel (0) target = $region37
    $region36: #{tpu_custom_call.1} parent=1 // pred_region
      _
    $region37: #{tpu_custom_call.1} parent=1 // pred_fallthru
      _
    %v34 = vld [vmem:[%s0] sm:$0xf]
    %v35 = vld [vmem:[%s0 + $0x4] sm:$0xf]
    %v36 = vld [vmem:[%s0 + $0x8] sm:$0xf]
    %v37 = vld [vmem:[%s0 + $0xc] sm:$0xf]
    %v38 = vld [vmem:[%s0 + $0x10] sm:$0xf]
    %v39 = vld [vmem:[%s0 + $0x14] sm:$0xf]
    %v40 = vld [vmem:[%s0 + $0x18] sm:$0xf]
    %v41 = vld [vmem:[%s0 + $0x1c] sm:$0xf]
    %v42 = vld [vmem:[%s0 + $0x20] sm:$0xf]
    %v43 = vld [vmem:[%s0 + $0x24] sm:$0xf]
    %v44 = vld [vmem:[%s0 + $0x28] sm:$0xf]
    %v45 = vld [vmem:[%s0 + $0x2c] sm:$0xf]
    %v46 = vld [vmem:[%s0 + $0x30] sm:$0xf]
    %v47 = vld [vmem:[%s0 + $0x34] sm:$0xf]
    %v48 = vld [vmem:[%s0 + $0x38] sm:$0xf]
    %v49 = vld [vmem:[%s0 + $0x3c] sm:$0xf]
    %v50 = vld [vmem:[%s1] sm:$0xf]
    %v51 = vld [vmem:[%s1 + $0x4] sm:$0xf]
    %v52 = vld [vmem:[%s1 + $0x8] sm:$0xf]
    %v53 = vld [vmem:[%s1 + $0xc] sm:$0xf]
    %v54 = vld [vmem:[%s2] sm:$0x1]
    %v56 = vlaneseq
    %v57 = vshrl.u32 %v56, 7
    %v58 = vsub.s32 0, %v57
    %v59 = vrot.slane %v54, %v58
    %v77 = vunpack.c.l.b16 %v34
    %v78 = vunpack.c.l.b16 %v35
    %v79 = vunpack.c.l.b16 %v36
    %v80 = vunpack.c.l.b16 %v37
    %v81 = vunpack.c.l.b16 %v38
    %v82 = vunpack.c.l.b16 %v39
    %v83 = vunpack.c.l.b16 %v40
    %v84 = vunpack.c.l.b16 %v41
    %v85 = vunpack.c.l.b16 %v42
    %v86 = vunpack.c.l.b16 %v43
    %v87 = vunpack.c.l.b16 %v44
    %v88 = vunpack.c.l.b16 %v45
    %v89 = vunpack.c.l.b16 %v46
    %v90 = vunpack.c.l.b16 %v47
    %v91 = vunpack.c.l.b16 %v48
    %v92 = vunpack.c.l.b16 %v49
    %v93 = vpack.c.b16 %v78, %v77
    %v94 = vpack.c.b16 %v80, %v79
    %v95 = vpack.c.b16 %v82, %v81
    %v96 = vpack.c.b16 %v84, %v83
    %v97 = vpack.c.b16 %v86, %v85
    %v98 = vpack.c.b16 %v88, %v87
    %v99 = vpack.c.b16 %v90, %v89
    %v100 = vpack.c.b16 %v92, %v91
    %v105 = vunpack.c.l.b16 %v50
    %v106 = vunpack.c.l.b16 %v51
    %v107 = vunpack.c.l.b16 %v52
    %v108 = vunpack.c.l.b16 %v53
    %v109 = vpack.c.b16 %v106, %v105
    %v110 = vpack.c.b16 %v108, %v107
    %vm113 = vcmask 261120
    %v115 = vsel %vm113, %v93, 0
    %v118 = vsel %vm113, %v94, 0
    %v121 = vsel %vm113, %v95, 0
    %v124 = vsel %vm113, %v96, 0
    %v127 = vsel %vm113, %v97, 0
    %v130 = vsel %vm113, %v98, 0
    %v133 = vsel %vm113, %v99, 0
    %v136 = vsel %vm113, %v100, 0
    %138 = vmatprep.subr.bf16.mxu0 0
    %139 = vmatpush1.bf16.msra.mxu0 %v109
    %140 = vmatprep.subr.bf16.mxu0 0
    %141 = vmatpush1.bf16.msra.mxu0 %v110
    %142 = vmatprep.subr.bf16.mxu0 0
    %143 = vmatpush1.bf16.msra.mxu0 0
    %144 = vmatprep.subr.bf16.mxu0 0
    %145 = vmatpush1.bf16.msra.mxu0 0
    %146 = vmatprep.subr.bf16.mxu0 0
    %147 = vmatpush1.bf16.msra.mxu0 0
    %148 = vmatprep.subr.bf16.mxu0 0
    %149 = vmatpush1.bf16.msra.mxu0 0
    %150 = vmatprep.subr.bf16.mxu0 0
    %151 = vmatpush1.bf16.msra.mxu0 0
    %152 = vmatprep.subr.bf16.mxu0 0
    %153 = vmatpush1.bf16.msra.mxu0 0
    %154 = vmatprep.subr.bf16.mxu0 0
    %155 = vmatpush1.bf16.msra.mxu0 0
    %156 = vmatprep.subr.bf16.mxu0 0
    %157 = vmatpush1.bf16.msra.mxu0 0
    %158 = vmatprep.subr.bf16.mxu0 0
    %159 = vmatpush1.bf16.msra.mxu0 0
    %160 = vmatprep.subr.bf16.mxu0 0
    %161 = vmatpush1.bf16.msra.mxu0 0
    %162 = vmatprep.subr.bf16.mxu0 0
    %163 = vmatpush1.bf16.msra.mxu0 0
    %164 = vmatprep.subr.bf16.mxu0 0
    %165 = vmatpush1.bf16.msra.mxu0 0
    %166 = vmatprep.subr.bf16.mxu0 0
    %167 = vmatpush1.bf16.msra.mxu0 0
    %168 = vmatprep.subr.bf16.mxu0 0
    %169 = vmatpush1.bf16.msra.mxu0 0
    %170 = vmatprep.mubr.bf16.mxu0 0
    %171 = vmatmul.mubr.bf16.gmra.mrb[0].mxu0 %v115
    %v172 = vpop.f32.mrb[0].mxu0
    %v173 = vadd.f32 %v59, %v172
    %v174 = vpop.f32.mrb[0].mxu0
    %v175 = vpop.f32.mrb[0].mxu0
    %v176 = vadd.f32 %v59, %v175
    %v177 = vpop.f32.mrb[0].mxu0
    %178 = vmatprep.mubr.bf16.mxu0 0
    %179 = vmatmul.mubr.bf16.gmra.mrb[0].mxu0 %v118
    %v180 = vpop.f32.mrb[0].mxu0
    %v181 = vadd.f32 %v59, %v180
    %v182 = vpop.f32.mrb[0].mxu0
    %v183 = vpop.f32.mrb[0].mxu0
    %v184 = vadd.f32 %v59, %v183
    %v185 = vpop.f32.mrb[0].mxu0
    %186 = vmatprep.mubr.bf16.mxu0 0
    %187 = vmatmul.mubr.bf16.gmra.mrb[0].mxu0 %v121
    %v188 = vpop.f32.mrb[0].mxu0
    %v189 = vadd.f32 %v59, %v188
    %v190 = vpop.f32.mrb[0].mxu0
    %v191 = vpop.f32.mrb[0].mxu0
    %v192 = vadd.f32 %v59, %v191
    %v193 = vpop.f32.mrb[0].mxu0
    %194 = vmatprep.mubr.bf16.mxu0 0
    %195 = vmatmul.mubr.bf16.gmra.mrb[0].mxu0 %v124
    %v196 = vpop.f32.mrb[0].mxu0
    %v197 = vadd.f32 %v59, %v196
    %v198 = vpop.f32.mrb[0].mxu0
    %v199 = vpop.f32.mrb[0].mxu0
    %v200 = vadd.f32 %v59, %v199
    %v201 = vpop.f32.mrb[0].mxu0
    %202 = vmatprep.mubr.bf16.mxu0 0
    %203 = vmatmul.mubr.bf16.gmra.mrb[0].mxu0 %v127
    %v204 = vpop.f32.mrb[0].mxu0
    %v205 = vadd.f32 %v59, %v204
    %v206 = vpop.f32.mrb[0].mxu0
    %v207 = vpop.f32.mrb[0].mxu0
    %v208 = vadd.f32 %v59, %v207
    %v209 = vpop.f32.mrb[0].mxu0
    %210 = vmatprep.mubr.bf16.mxu0 0
    %211 = vmatmul.mubr.bf16.gmra.mrb[0].mxu0 %v130
    %v212 = vpop.f32.mrb[0].mxu0
    %v213 = vadd.f32 %v59, %v212
    %v214 = vpop.f32.mrb[0].mxu0
    %v215 = vpop.f32.mrb[0].mxu0
    %v216 = vadd.f32 %v59, %v215
    %v217 = vpop.f32.mrb[0].mxu0
    %218 = vmatprep.mubr.bf16.mxu0 0
    %219 = vmatmul.mubr.bf16.gmra.mrb[0].mxu0 %v133
    %v220 = vpop.f32.mrb[0].mxu0
    %v221 = vadd.f32 %v59, %v220
    %v222 = vpop.f32.mrb[0].mxu0
    %v223 = vpop.f32.mrb[0].mxu0
    %v224 = vadd.f32 %v59, %v223
    %v225 = vpop.f32.mrb[0].mxu0
    %226 = vmatprep.mubr.bf16.mxu0 0
    %227 = vmatmul.mubr.bf16.gmra.mrb[0].mxu0 %v136
    %v228 = vpop.f32.mrb[0].mxu0
    %v229 = vadd.f32 %v59, %v228
    %v230 = vpop.f32.mrb[0].mxu0
    %v231 = vpop.f32.mrb[0].mxu0
    %v232 = vadd.f32 %v59, %v231
    %v233 = vpop.f32.mrb[0].mxu0
    %234 = vdwg.mxu0
    %v235 = vmax.f32 %v173, 0.0
    %v236 = vmax.f32 %v176, 0.0
    %v237 = vmax.f32 %v181, 0.0
    %v238 = vmax.f32 %v184, 0.0
    %v239 = vmax.f32 %v189, 0.0
    %v240 = vmax.f32 %v192, 0.0
    %v241 = vmax.f32 %v197, 0.0
    %v242 = vmax.f32 %v200, 0.0
    %v243 = vmax.f32 %v205, 0.0
    %v244 = vmax.f32 %v208, 0.0
    %v245 = vmax.f32 %v213, 0.0
    %v246 = vmax.f32 %v216, 0.0
    %v247 = vmax.f32 %v221, 0.0
    %v248 = vmax.f32 %v224, 0.0
    %v249 = vmax.f32 %v229, 0.0
    %v250 = vmax.f32 %v232, 0.0
    %v251 = vpack.c.bf16 %v236, %v235
    %v252 = vpack.c.bf16 %v238, %v237
    %v253 = vpack.c.bf16 %v240, %v239
    %v254 = vpack.c.bf16 %v242, %v241
    %v255 = vpack.c.bf16 %v244, %v243
    %v256 = vpack.c.bf16 %v246, %v245
    %v257 = vpack.c.bf16 %v248, %v247
    %v258 = vpack.c.bf16 %v250, %v249
    %v259 = vld [vmem:[%s3] sm:$0xf]
    %v260 = vld [vmem:[%s3 + $0x4] sm:$0xf]
    %v261 = vld [vmem:[%s3 + $0x8] sm:$0xf]
    %v262 = vld [vmem:[%s3 + $0xc] sm:$0xf]
    %v263 = vld [vmem:[%s3 + $0x10] sm:$0xf]
    %v264 = vld [vmem:[%s3 + $0x14] sm:$0xf]
    %v265 = vld [vmem:[%s3 + $0x18] sm:$0xf]
    %v266 = vld [vmem:[%s3 + $0x1c] sm:$0xf]
    %v267 = vld [vmem:[%s4] sm:$0x1]
    %v269 = vlaneseq
    %v270 = vshrl.u32 %v269, 7
    %v271 = vsub.s32 0, %v270
    %v272 = vrot.slane %v267, %v271
    %v282 = vunpack.c.l.b16 %v259
    %v283 = vunpack.c.l.b16 %v260
    %v284 = vunpack.c.l.b16 %v261
    %v285 = vunpack.c.l.b16 %v262
    %v286 = vunpack.c.l.b16 %v263
    %v287 = vunpack.c.l.b16 %v264
    %v288 = vunpack.c.l.b16 %v265
    %v289 = vunpack.c.l.b16 %v266
    %v290 = vpack.c.b16 %v283, %v282
    %v291 = vpack.c.b16 %v285, %v284
    %v292 = vpack.c.b16 %v287, %v286
    %v293 = vpack.c.b16 %v289, %v288
    %vm298 = vcmask 523264
    %v300 = vsel %vm298, %v251, 0
    %v303 = vsel %vm298, %v252, 0
    %v306 = vsel %vm298, %v253, 0
    %v309 = vsel %vm298, %v254, 0
    %v312 = vsel %vm298, %v255, 0
    %v315 = vsel %vm298, %v256, 0
    %v318 = vsel %vm298, %v257, 0
    %v321 = vsel %vm298, %v258, 0
    %323 = vmatprep.subr.bf16.mxu0 0
    %324 = vmatpush1.bf16.msra.mxu0 %v290
    %325 = vmatprep.subr.bf16.mxu0 0
    %326 = vmatpush1.bf16.msra.mxu0 %v291
    %327 = vmatprep.subr.bf16.mxu0 0
    %328 = vmatpush1.bf16.msra.mxu0 %v292
    %329 = vmatprep.subr.bf16.mxu0 0
    %330 = vmatpush1.bf16.msra.mxu0 %v293
    %331 = vmatprep.subr.bf16.mxu0 0
    %332 = vmatpush1.bf16.msra.mxu0 0
    %333 = vmatprep.subr.bf16.mxu0 0
    %334 = vmatpush1.bf16.msra.mxu0 0
    %335 = vmatprep.subr.bf16.mxu0 0
    %336 = vmatpush1.bf16.msra.mxu0 0
    %337 = vmatprep.subr.bf16.mxu0 0
    %338 = vmatpush1.bf16.msra.mxu0 0
    %339 = vmatprep.subr.bf16.mxu0 0
    %340 = vmatpush1.bf16.msra.mxu0 0
    %341 = vmatprep.subr.bf16.mxu0 0
    %342 = vmatpush1.bf16.msra.mxu0 0
    %343 = vmatprep.subr.bf16.mxu0 0
    %344 = vmatpush1.bf16.msra.mxu0 0
    %345 = vmatprep.subr.bf16.mxu0 0
    %346 = vmatpush1.bf16.msra.mxu0 0
    %347 = vmatprep.subr.bf16.mxu0 0
    %348 = vmatpush1.bf16.msra.mxu0 0
    %349 = vmatprep.subr.bf16.mxu0 0
    %350 = vmatpush1.bf16.msra.mxu0 0
    %351 = vmatprep.subr.bf16.mxu0 0
    %352 = vmatpush1.bf16.msra.mxu0 0
    %353 = vmatprep.subr.bf16.mxu0 0
    %354 = vmatpush1.bf16.msra.mxu0 0
    %355 = vmatprep.mubr.bf16.mxu0 0
    %356 = vmatmul.mubr.bf16.gmra.mrb[0].mxu0 %v300
    %v357 = vpop.f32.mrb[0].mxu0
    %v358 = vadd.f32 %v272, %v357
    %v359 = vpop.f32.mrb[0].mxu0
    %v360 = vpop.f32.mrb[0].mxu0
    %v361 = vadd.f32 %v272, %v360
    %v362 = vpop.f32.mrb[0].mxu0
    %363 = vmatprep.mubr.bf16.mxu0 0
    %364 = vmatmul.mubr.bf16.gmra.mrb[0].mxu0 %v303
    %v365 = vpop.f32.mrb[0].mxu0
    %v366 = vadd.f32 %v272, %v365
    %v367 = vpop.f32.mrb[0].mxu0
    %v368 = vpop.f32.mrb[0].mxu0
    %v369 = vadd.f32 %v272, %v368
    %v370 = vpop.f32.mrb[0].mxu0
    %371 = vmatprep.mubr.bf16.mxu0 0
    %372 = vmatmul.mubr.bf16.gmra.mrb[0].mxu0 %v306
    %v373 = vpop.f32.mrb[0].mxu0
    %v374 = vadd.f32 %v272, %v373
    %v375 = vpop.f32.mrb[0].mxu0
    %v376 = vpop.f32.mrb[0].mxu0
    %v377 = vadd.f32 %v272, %v376
    %v378 = vpop.f32.mrb[0].mxu0
    %379 = vmatprep.mubr.bf16.mxu0 0
    %380 = vmatmul.mubr.bf16.gmra.mrb[0].mxu0 %v309
    %v381 = vpop.f32.mrb[0].mxu0
    %v382 = vadd.f32 %v272, %v381
    %v383 = vpop.f32.mrb[0].mxu0
    %v384 = vpop.f32.mrb[0].mxu0
    %v385 = vadd.f32 %v272, %v384
    %v386 = vpop.f32.mrb[0].mxu0
    %387 = vmatprep.mubr.bf16.mxu0 0
    %388 = vmatmul.mubr.bf16.gmra.mrb[0].mxu0 %v312
    %v389 = vpop.f32.mrb[0].mxu0
    %v390 = vadd.f32 %v272, %v389
    %v391 = vpop.f32.mrb[0].mxu0
    %v392 = vpop.f32.mrb[0].mxu0
    %v393 = vadd.f32 %v272, %v392
    %v394 = vpop.f32.mrb[0].mxu0
    %395 = vmatprep.mubr.bf16.mxu0 0
    %396 = vmatmul.mubr.bf16.gmra.mrb[0].mxu0 %v315
    %v397 = vpop.f32.mrb[0].mxu0
    %v398 = vadd.f32 %v272, %v397
    %v399 = vpop.f32.mrb[0].mxu0
    %v400 = vpop.f32.mrb[0].mxu0
    %v401 = vadd.f32 %v272, %v400
    %v402 = vpop.f32.mrb[0].mxu0
    %403 = vmatprep.mubr.bf16.mxu0 0
    %404 = vmatmul.mubr.bf16.gmra.mrb[0].mxu0 %v318
    %v405 = vpop.f32.mrb[0].mxu0
    %v406 = vadd.f32 %v272, %v405
    %v407 = vpop.f32.mrb[0].mxu0
    %v408 = vpop.f32.mrb[0].mxu0
    %v409 = vadd.f32 %v272, %v408
    %v410 = vpop.f32.mrb[0].mxu0
    %411 = vmatprep.mubr.bf16.mxu0 0
    %412 = vmatmul.mubr.bf16.gmra.mrb[0].mxu0 %v321
    %v413 = vpop.f32.mrb[0].mxu0
    %v414 = vadd.f32 %v272, %v413
    %v415 = vpop.f32.mrb[0].mxu0
    %v416 = vpop.f32.mrb[0].mxu0
    %v417 = vadd.f32 %v272, %v416
    %v418 = vpop.f32.mrb[0].mxu0
    %419 = vdwg.mxu0
    %v420 = vmax.f32 %v358, 0.0
    %v421 = vmax.f32 %v361, 0.0
    %v422 = vmax.f32 %v366, 0.0
    %v423 = vmax.f32 %v369, 0.0
    %v424 = vmax.f32 %v374, 0.0
    %v425 = vmax.f32 %v377, 0.0
    %v426 = vmax.f32 %v382, 0.0
    %v427 = vmax.f32 %v385, 0.0
    %v428 = vmax.f32 %v390, 0.0
    %v429 = vmax.f32 %v393, 0.0
    %v430 = vmax.f32 %v398, 0.0
    %v431 = vmax.f32 %v401, 0.0
    %v432 = vmax.f32 %v406, 0.0
    %v433 = vmax.f32 %v409, 0.0
    %v434 = vmax.f32 %v414, 0.0
    %v435 = vmax.f32 %v417, 0.0
    %v436 = vpack.c.bf16 %v421, %v420
    %v437 = vpack.c.bf16 %v423, %v422
    %v438 = vpack.c.bf16 %v425, %v424
    %v439 = vpack.c.bf16 %v427, %v426
    %v440 = vpack.c.bf16 %v429, %v428
    %v441 = vpack.c.bf16 %v431, %v430
    %v442 = vpack.c.bf16 %v433, %v432
    %v443 = vpack.c.bf16 %v435, %v434
    %v444 = vld [vmem:[%s5] sm:$0xf]
    %v445 = vld [vmem:[%s5 + $0x4] sm:$0xf]
    %v446 = vld [vmem:[%s5 + $0x8] sm:$0xf]
    %v447 = vld [vmem:[%s5 + $0xc] sm:$0xf]
    %v448 = vld [vmem:[%s5 + $0x10] sm:$0xf]
    %v449 = vld [vmem:[%s5 + $0x14] sm:$0xf]
    %v450 = vld [vmem:[%s5 + $0x18] sm:$0xf]
    %v451 = vld [vmem:[%s5 + $0x1c] sm:$0xf]
    %v452 = vld [vmem:[%s6] sm:$0x1]
    %v454 = vlaneseq
    %v455 = vshrl.u32 %v454, 7
    %v456 = vsub.s32 0, %v455
    %v457 = vrot.slane %v452, %v456
    %v467 = vunpack.c.l.b16 %v444
    %v468 = vunpack.c.l.b16 %v445
    %v469 = vunpack.c.l.b16 %v446
    %v470 = vunpack.c.l.b16 %v447
    %v471 = vunpack.c.l.b16 %v448
    %v472 = vunpack.c.l.b16 %v449
    %v473 = vunpack.c.l.b16 %v450
    %v474 = vunpack.c.l.b16 %v451
    %v475 = vpack.c.b16 %v468, %v467
    %v476 = vpack.c.b16 %v470, %v469
    %v477 = vpack.c.b16 %v472, %v471
    %v478 = vpack.c.b16 %v474, %v473
    %v484 = vsel %vm298, %v436, 0
    %v487 = vsel %vm298, %v437, 0
    %v490 = vsel %vm298, %v438, 0
    %v493 = vsel %vm298, %v439, 0
    %v496 = vsel %vm298, %v440, 0
    %v499 = vsel %vm298, %v441, 0
    %v502 = vsel %vm298, %v442, 0
    %v505 = vsel %vm298, %v443, 0
    %507 = vmatprep.subr.bf16.mxu0 0
    %508 = vmatpush1.bf16.msra.mxu0 %v475
    %509 = vmatprep.subr.bf16.mxu0 0
    %510 = vmatpush1.bf16.msra.mxu0 %v476
    %511 = vmatprep.subr.bf16.mxu0 0
    %512 = vmatpush1.bf16.msra.mxu0 %v477
    %513 = vmatprep.subr.bf16.mxu0 0
    %514 = vmatpush1.bf16.msra.mxu0 %v478
    %515 = vmatprep.subr.bf16.mxu0 0
    %516 = vmatpush1.bf16.msra.mxu0 0
    %517 = vmatprep.subr.bf16.mxu0 0
    %518 = vmatpush1.bf16.msra.mxu0 0
    %519 = vmatprep.subr.bf16.mxu0 0
    %520 = vmatpush1.bf16.msra.mxu0 0
    %521 = vmatprep.subr.bf16.mxu0 0
    %522 = vmatpush1.bf16.msra.mxu0 0
    %523 = vmatprep.subr.bf16.mxu0 0
    %524 = vmatpush1.bf16.msra.mxu0 0
    %525 = vmatprep.subr.bf16.mxu0 0
    %526 = vmatpush1.bf16.msra.mxu0 0
    %527 = vmatprep.subr.bf16.mxu0 0
    %528 = vmatpush1.bf16.msra.mxu0 0
    %529 = vmatprep.subr.bf16.mxu0 0
    %530 = vmatpush1.bf16.msra.mxu0 0
    %531 = vmatprep.subr.bf16.mxu0 0
    %532 = vmatpush1.bf16.msra.mxu0 0
    %533 = vmatprep.subr.bf16.mxu0 0
    %534 = vmatpush1.bf16.msra.mxu0 0
    %535 = vmatprep.subr.bf16.mxu0 0
    %536 = vmatpush1.bf16.msra.mxu0 0
    %537 = vmatprep.subr.bf16.mxu0 0
    %538 = vmatpush1.bf16.msra.mxu0 0
    %539 = vmatprep.mubr.bf16.mxu0 0
    %540 = vmatmul.mubr.bf16.gmra.mrb[0].mxu0 %v484
    %v541 = vpop.f32.mrb[0].mxu0
    %v542 = vadd.f32 %v457, %v541
    %v543 = vpop.f32.mrb[0].mxu0
    %v544 = vpop.f32.mrb[0].mxu0
    %v545 = vadd.f32 %v457, %v544
    %v546 = vpop.f32.mrb[0].mxu0
    %547 = vmatprep.mubr.bf16.mxu0 0
    %548 = vmatmul.mubr.bf16.gmra.mrb[0].mxu0 %v487
    %v549 = vpop.f32.mrb[0].mxu0
    %v550 = vadd.f32 %v457, %v549
    %v551 = vpop.f32.mrb[0].mxu0
    %v552 = vpop.f32.mrb[0].mxu0
    %v553 = vadd.f32 %v457, %v552
    %v554 = vpop.f32.mrb[0].mxu0
    %555 = vmatprep.mubr.bf16.mxu0 0
    %556 = vmatmul.mubr.bf16.gmra.mrb[0].mxu0 %v490
    %v557 = vpop.f32.mrb[0].mxu0
    %v558 = vadd.f32 %v457, %v557
    %v559 = vpop.f32.mrb[0].mxu0
    %v560 = vpop.f32.mrb[0].mxu0
    %v561 = vadd.f32 %v457, %v560
    %v562 = vpop.f32.mrb[0].mxu0
    %563 = vmatprep.mubr.bf16.mxu0 0
    %564 = vmatmul.mubr.bf16.gmra.mrb[0].mxu0 %v493
    %v565 = vpop.f32.mrb[0].mxu0
    %v566 = vadd.f32 %v457, %v565
    %v567 = vpop.f32.mrb[0].mxu0
    %v568 = vpop.f32.mrb[0].mxu0
    %v569 = vadd.f32 %v457, %v568
    %v570 = vpop.f32.mrb[0].mxu0
    %571 = vmatprep.mubr.bf16.mxu0 0
    %572 = vmatmul.mubr.bf16.gmra.mrb[0].mxu0 %v496
    %v573 = vpop.f32.mrb[0].mxu0
    %v574 = vadd.f32 %v457, %v573
    %v575 = vpop.f32.mrb[0].mxu0
    %v576 = vpop.f32.mrb[0].mxu0
    %v577 = vadd.f32 %v457, %v576
    %v578 = vpop.f32.mrb[0].mxu0
    %579 = vmatprep.mubr.bf16.mxu0 0
    %580 = vmatmul.mubr.bf16.gmra.mrb[0].mxu0 %v499
    %v581 = vpop.f32.mrb[0].mxu0
    %v582 = vadd.f32 %v457, %v581
    %v583 = vpop.f32.mrb[0].mxu0
    %v584 = vpop.f32.mrb[0].mxu0
    %v585 = vadd.f32 %v457, %v584
    %v586 = vpop.f32.mrb[0].mxu0
    %587 = vmatprep.mubr.bf16.mxu0 0
    %588 = vmatmul.mubr.bf16.gmra.mrb[0].mxu0 %v502
    %v589 = vpop.f32.mrb[0].mxu0
    %v590 = vadd.f32 %v457, %v589
    %v591 = vpop.f32.mrb[0].mxu0
    %v592 = vpop.f32.mrb[0].mxu0
    %v593 = vadd.f32 %v457, %v592
    %v594 = vpop.f32.mrb[0].mxu0
    %595 = vmatprep.mubr.bf16.mxu0 0
    %596 = vmatmul.mubr.bf16.gmra.mrb[0].mxu0 %v505
    %v597 = vpop.f32.mrb[0].mxu0
    %v598 = vadd.f32 %v457, %v597
    %v599 = vpop.f32.mrb[0].mxu0
    %v600 = vpop.f32.mrb[0].mxu0
    %v601 = vadd.f32 %v457, %v600
    %v602 = vpop.f32.mrb[0].mxu0
    %603 = vdwg.mxu0
    %v604 = vmax.f32 %v542, 0.0
    %v605 = vmax.f32 %v545, 0.0
    %v606 = vmax.f32 %v550, 0.0
    %v607 = vmax.f32 %v553, 0.0
    %v608 = vmax.f32 %v558, 0.0
    %v609 = vmax.f32 %v561, 0.0
    %v610 = vmax.f32 %v566, 0.0
    %v611 = vmax.f32 %v569, 0.0
    %v612 = vmax.f32 %v574, 0.0
    %v613 = vmax.f32 %v577, 0.0
    %v614 = vmax.f32 %v582, 0.0
    %v615 = vmax.f32 %v585, 0.0
    %v616 = vmax.f32 %v590, 0.0
    %v617 = vmax.f32 %v593, 0.0
    %v618 = vmax.f32 %v598, 0.0
    %v619 = vmax.f32 %v601, 0.0
    %v620 = vpack.c.bf16 %v605, %v604
    %v621 = vpack.c.bf16 %v607, %v606
    %v622 = vpack.c.bf16 %v609, %v608
    %v623 = vpack.c.bf16 %v611, %v610
    %v624 = vpack.c.bf16 %v613, %v612
    %v625 = vpack.c.bf16 %v615, %v614
    %v626 = vpack.c.bf16 %v617, %v616
    %v627 = vpack.c.bf16 %v619, %v618
    %v628 = vld [vmem:[%s7] sm:$0xf]
    %v629 = vld [vmem:[%s7 + $0x4] sm:$0xf]
    %v630 = vld [vmem:[%s7 + $0x8] sm:$0xf]
    %v631 = vld [vmem:[%s7 + $0xc] sm:$0xf]
    %v632 = vld [vmem:[%s8] sm:$0x1]
    %v634 = vlaneseq
    %v635 = vshrl.u32 %v634, 7
    %v636 = vsub.s32 0, %v635
    %v637 = vrot.slane %v632, %v636
    %v643 = vunpack.c.l.b16 %v628
    %v644 = vunpack.c.l.b16 %v629
    %v645 = vunpack.c.l.b16 %v630
    %v646 = vunpack.c.l.b16 %v631
    %v647 = vpack.c.b16 %v644, %v643
    %v648 = vpack.c.b16 %v646, %v645
    %v652 = vsel %vm113, %v620, 0
    %v655 = vsel %vm113, %v621, 0
    %v658 = vsel %vm113, %v622, 0
    %v661 = vsel %vm113, %v623, 0
    %v664 = vsel %vm113, %v624, 0
    %v667 = vsel %vm113, %v625, 0
    %v670 = vsel %vm113, %v626, 0
    %v673 = vsel %vm113, %v627, 0
    %675 = vmatprep.subr.bf16.mxu0 0
    %676 = vmatpush1.bf16.msra.mxu0 %v647
    %677 = vmatprep.subr.bf16.mxu0 0
    %678 = vmatpush1.bf16.msra.mxu0 %v648
    %679 = vmatprep.subr.bf16.mxu0 0
    %680 = vmatpush1.bf16.msra.mxu0 0
    %681 = vmatprep.subr.bf16.mxu0 0
    %682 = vmatpush1.bf16.msra.mxu0 0
    %683 = vmatprep.subr.bf16.mxu0 0
    %684 = vmatpush1.bf16.msra.mxu0 0
    %685 = vmatprep.subr.bf16.mxu0 0
    %686 = vmatpush1.bf16.msra.mxu0 0
    %687 = vmatprep.subr.bf16.mxu0 0
    %688 = vmatpush1.bf16.msra.mxu0 0
    %689 = vmatprep.subr.bf16.mxu0 0
    %690 = vmatpush1.bf16.msra.mxu0 0
    %691 = vmatprep.subr.bf16.mxu0 0
    %692 = vmatpush1.bf16.msra.mxu0 0
    %693 = vmatprep.subr.bf16.mxu0 0
    %694 = vmatpush1.bf16.msra.mxu0 0
    %695 = vmatprep.subr.bf16.mxu0 0
    %696 = vmatpush1.bf16.msra.mxu0 0
    %697 = vmatprep.subr.bf16.mxu0 0
    %698 = vmatpush1.bf16.msra.mxu0 0
    %699 = vmatprep.subr.bf16.mxu0 0
    %700 = vmatpush1.bf16.msra.mxu0 0
    %701 = vmatprep.subr.bf16.mxu0 0
    %702 = vmatpush1.bf16.msra.mxu0 0
    %703 = vmatprep.subr.bf16.mxu0 0
    %704 = vmatpush1.bf16.msra.mxu0 0
    %705 = vmatprep.subr.bf16.mxu0 0
    %706 = vmatpush1.bf16.msra.mxu0 0
    %707 = vmatprep.mubr.bf16.mxu0 0
    %708 = vmatmul.mubr.bf16.gmra.mrb[0].mxu0 %v652
    %v709 = vpop.f32.mrb[0].mxu0
    %v710 = vadd.f32 %v637, %v709
    %v711 = vpop.f32.mrb[0].mxu0
    %v712 = vpop.f32.mrb[0].mxu0
    %v713 = vadd.f32 %v637, %v712
    %v714 = vpop.f32.mrb[0].mxu0
    %715 = vmatprep.mubr.bf16.mxu0 0
    %716 = vmatmul.mubr.bf16.gmra.mrb[0].mxu0 %v655
    %v717 = vpop.f32.mrb[0].mxu0
    %v718 = vadd.f32 %v637, %v717
    %v719 = vpop.f32.mrb[0].mxu0
    %v720 = vpop.f32.mrb[0].mxu0
    %v721 = vadd.f32 %v637, %v720
    %v722 = vpop.f32.mrb[0].mxu0
    %723 = vmatprep.mubr.bf16.mxu0 0
    %724 = vmatmul.mubr.bf16.gmra.mrb[0].mxu0 %v658
    %v725 = vpop.f32.mrb[0].mxu0
    %v726 = vadd.f32 %v637, %v725
    %v727 = vpop.f32.mrb[0].mxu0
    %v728 = vpop.f32.mrb[0].mxu0
    %v729 = vadd.f32 %v637, %v728
    %v730 = vpop.f32.mrb[0].mxu0
    %731 = vmatprep.mubr.bf16.mxu0 0
    %732 = vmatmul.mubr.bf16.gmra.mrb[0].mxu0 %v661
    %v733 = vpop.f32.mrb[0].mxu0
    %v734 = vadd.f32 %v637, %v733
    %v735 = vpop.f32.mrb[0].mxu0
    %v736 = vpop.f32.mrb[0].mxu0
    %v737 = vadd.f32 %v637, %v736
    %v738 = vpop.f32.mrb[0].mxu0
    %739 = vmatprep.mubr.bf16.mxu0 0
    %740 = vmatmul.mubr.bf16.gmra.mrb[0].mxu0 %v664
    %v741 = vpop.f32.mrb[0].mxu0
    %v742 = vadd.f32 %v637, %v741
    %v743 = vpop.f32.mrb[0].mxu0
    %v744 = vpop.f32.mrb[0].mxu0
    %v745 = vadd.f32 %v637, %v744
    %v746 = vpop.f32.mrb[0].mxu0
    %747 = vmatprep.mubr.bf16.mxu0 0
    %748 = vmatmul.mubr.bf16.gmra.mrb[0].mxu0 %v667
    %v749 = vpop.f32.mrb[0].mxu0
    %v750 = vadd.f32 %v637, %v749
    %v751 = vpop.f32.mrb[0].mxu0
    %v752 = vpop.f32.mrb[0].mxu0
    %v753 = vadd.f32 %v637, %v752
    %v754 = vpop.f32.mrb[0].mxu0
    %755 = vmatprep.mubr.bf16.mxu0 0
    %756 = vmatmul.mubr.bf16.gmra.mrb[0].mxu0 %v670
    %v757 = vpop.f32.mrb[0].mxu0
    %v758 = vadd.f32 %v637, %v757
    %v759 = vpop.f32.mrb[0].mxu0
    %v760 = vpop.f32.mrb[0].mxu0
    %v761 = vadd.f32 %v637, %v760
    %v762 = vpop.f32.mrb[0].mxu0
    %763 = vmatprep.mubr.bf16.mxu0 0
    %764 = vmatmul.mubr.bf16.gmra.mrb[0].mxu0 %v673
    %v765 = vpop.f32.mrb[0].mxu0
    %v766 = vadd.f32 %v637, %v765
    %v767 = vpop.f32.mrb[0].mxu0
    %v768 = vpop.f32.mrb[0].mxu0
    %v769 = vadd.f32 %v637, %v768
    %v770 = vpop.f32.mrb[0].mxu0
    %771 = vdwg.mxu0
    %772 = vst [vmem:[#allocation2] sm:$0xff] %v710
    %773 = vst [vmem:[#allocation2 + $0x8] sm:$0xff] %v713
    %774 = vst [vmem:[#allocation2 + $0x10] sm:$0xff] %v718
    %775 = vst [vmem:[#allocation2 + $0x18] sm:$0xff] %v721
    %776 = vst [vmem:[#allocation2 + $0x20] sm:$0xff] %v726
    %777 = vst [vmem:[#allocation2 + $0x28] sm:$0xff] %v729
    %778 = vst [vmem:[#allocation2 + $0x30] sm:$0xff] %v734
    %779 = vst [vmem:[#allocation2 + $0x38] sm:$0xff] %v737
    %780 = vst [vmem:[#allocation2 + $0x40] sm:$0xff] %v742
    %781 = vst [vmem:[#allocation2 + $0x48] sm:$0xff] %v745
    %782 = vst [vmem:[#allocation2 + $0x50] sm:$0xff] %v750
    %783 = vst [vmem:[#allocation2 + $0x58] sm:$0xff] %v753
    %784 = vst [vmem:[#allocation2 + $0x60] sm:$0xff] %v758
    %785 = vst [vmem:[#allocation2 + $0x68] sm:$0xff] %v761
    %786 = vst [vmem:[#allocation2 + $0x70] sm:$0xff] %v766
    %787 = vst [vmem:[#allocation2 + $0x78] sm:$0xff] %v769
    // Predicated region
    $region38: #{tpu_custom_call.1} parent=1 // pred_check
      _
    $region39: #{tpu_custom_call.1} parent=1 // pred_check_branch
      %789 = sbr.rel (0) target = $region41
    $region40: #{tpu_custom_call.1} parent=1 // pred_region
      %s791 = ssub.s32 2048, 2048
      %792 = vsyncadd [#allocation3], %s791
      %s793 = sshll.u32 [#allocation2], 4
      %s794 = int_to_ptr.vmem [resolvable:$true] %s793
      %799 = dma.vmem_to_hbm [thread:$0]  %s794, 2048, %s9, [#allocation3], 128, 128, 8
    $region41: #{tpu_custom_call.1} parent=1 // pred_fallthru
      _
    // Predicated region
    $region42: #{tpu_custom_call.1} parent=1 // pred_check
      _
    $region43: #{tpu_custom_call.1} parent=1 // pred_check_branch
      %801 = sbr.rel (0) target = $region45
    $region44: #{tpu_custom_call.1} parent=1 // pred_region
      %802 = dma.done [#allocation3], 2048
    $region45: #{tpu_custom_call.1} parent=1 // pred_fallthru
      _
    %803 = vsyncpa [#allocation3], 1

</llo_original>
